<compile_context>
chip_gen: v6e
topology: v6e:2x2x1
jax: 0.10.0
libtpu: 0.0.40
codegen_flags: <defaults>
</compile_context>

<pallas_src>
import jax
import jax.numpy as jnp
from jax.experimental import pallas as pl
from jax.experimental.pallas import tpu as pltpu

_EPS = 1e-5


def _cbn_kernel_bias(y_ref, x_ref, gtab_ref, btab_ref, out_ref):
    # x tile: (N, TC) ; gamma/beta table tiles: (L, TC) ; y: (N, 1) int32
    x = x_ref[...].astype(jnp.float32)
    n = x.shape[0]
    inv_n = 1.0 / n
    mean = jnp.sum(x, axis=0, keepdims=True) * inv_n
    centered = x - mean
    var = jnp.sum(centered * centered, axis=0, keepdims=True) * inv_n
    normed = centered * jax.lax.rsqrt(var + _EPS)

    # Fused embedding gather: one-hot(y, L) on the VPU, gather as an MXU matmul.
    L = gtab_ref.shape[0]
    onehot = (y_ref[...] == jax.lax.broadcasted_iota(jnp.int32, (n, L), 1)).astype(jnp.float32)
    gamma = jnp.dot(onehot, gtab_ref[...].astype(jnp.float32),
                    preferred_element_type=jnp.float32)
    beta = jnp.dot(onehot, btab_ref[...].astype(jnp.float32),
                   preferred_element_type=jnp.float32)

    out_ref[...] = (gamma * normed + beta).astype(out_ref.dtype)


def _cbn_kernel_nobias(y_ref, x_ref, gtab_ref, out_ref):
    x = x_ref[...].astype(jnp.float32)
    n = x.shape[0]
    inv_n = 1.0 / n
    mean = jnp.sum(x, axis=0, keepdims=True) * inv_n
    centered = x - mean
    var = jnp.sum(centered * centered, axis=0, keepdims=True) * inv_n
    normed = centered * jax.lax.rsqrt(var + _EPS)

    L = gtab_ref.shape[0]
    onehot = (y_ref[...] == jax.lax.broadcasted_iota(jnp.int32, (n, L), 1)).astype(jnp.float32)
    gamma = jnp.dot(onehot, gtab_ref[...].astype(jnp.float32),
                    preferred_element_type=jnp.float32)

    out_ref[...] = (gamma * normed).astype(out_ref.dtype)


def _pick_feature_tile(C, N, L, budget_bytes=12 * 1024 * 1024):
    """Largest lane tile that (a) satisfies the (8,128) rule and (b) keeps the
    double-buffered working set (x, out, gamma/beta table slabs) under budget_bytes,
    which fits the scoped-VMEM default on v5e/v6e/v7x."""
    if C % 128 != 0:
        # Small / odd feature count: single full-width tile (equal-to-full-dim is legal).
        # TODO(synk): for tiny C (<128) a lane-dense layout would need packing several
        # independent problems along the lane axis; left as-is for correctness.
        return C
    for tc in (2048, 1024, 512, 256, 128):
        if C % tc == 0 and 2 * 4 * tc * (2 * N + 2 * L) <= budget_bytes:
            return tc
    return 128


def conditional_batchnorm1d(x, y, embed_weight, num_features, bias=True):
    """x: (N, C) float, y: (N,) int indices, embed_weight: (L, 2C) if bias else (L, C)."""
    N, C = x.shape
    assert C == num_features
    L = embed_weight.shape[0]

    y2 = y.reshape(N, 1).astype(jnp.int32)
    if bias:
        # Only the tiny (L, C) table halves are split in the wrapper; the (N, C)
        # gathered gamma/beta never materialize in HBM (gather is fused in-kernel).
        gamma_tab = embed_weight[:, :C]
        beta_tab = embed_weight[:, C:]
    else:
        gamma_tab = embed_weight

    tc = _pick_feature_tile(C, N, L)
    grid = (C // tc,)

    y_spec = pl.BlockSpec((N, 1), lambda j: (0, 0))
    x_spec = pl.BlockSpec((N, tc), lambda j: (0, j))
    tab_spec = pl.BlockSpec((L, tc), lambda j: (0, j))
    out_spec = pl.BlockSpec((N, tc), lambda j: (0, j))

    compiler_params = pltpu.CompilerParams(dimension_semantics=("parallel",))

    if bias:
        kernel = _cbn_kernel_bias
        in_specs = [y_spec, x_spec, tab_spec, tab_spec]
        args = (y2, x, gamma_tab, beta_tab)
    else:
        kernel = _cbn_kernel_nobias
        in_specs = [y_spec, x_spec, tab_spec]
        args = (y2, x, gamma_tab)

    return pl.pallas_call(
        kernel,
        out_shape=jax.ShapeDtypeStruct((N, C), x.dtype),
        grid=grid,
        in_specs=in_specs,
        out_specs=out_spec,
        compiler_params=compiler_params,
    )(*args)


if __name__ == "__main__":
    # Small shapes consistent with the module's forward: x (N, C), y (N,) in [0, L)
    N, C, L = 8, 16, 10

    key = jax.random.PRNGKey(0)
    k_x, k_y, k_emb = jax.random.split(key, 3)

    x = jax.random.normal(k_x, (N, C), dtype=jnp.float32)
    y = jax.random.randint(k_y, (N,), 0, L, dtype=jnp.int32)

    # Deterministic parameter init mirroring __init__ (bias=True):
    #   embed.weight[:, :C].uniform_()  ;  embed.weight[:, C:].zero_()
    gamma_part = jax.random.uniform(k_emb, (L, C), dtype=jnp.float32)
    beta_part = jnp.zeros((L, C), dtype=jnp.float32)
    embed_weight = jnp.concatenate([gamma_part, beta_part], axis=1)  # (L, 2C)

    out = conditional_batchnorm1d(x, y, embed_weight, C, bias=True)
    out = jax.block_until_ready(out)

    # Pure-JAX reference (training-mode BN with biased variance).
    mean = jnp.mean(x, axis=0, keepdims=True)
    var = jnp.mean((x - mean) ** 2, axis=0, keepdims=True)
    ref_bn = (x - mean) / jnp.sqrt(var + _EPS)
    g = embed_weight[y][:, :C]
    b = embed_weight[y][:, C:]
    ref = g * ref_bn + b
    assert jnp.allclose(out, ref, atol=1e-5, rtol=1e-5), "bias=True mismatch vs reference"

    # bias=False path: embedding table (L, C), no beta streamed, no add in kernel.
    embed_weight_nb = jax.random.uniform(k_emb, (L, C), dtype=jnp.float32)
    out_nb = conditional_batchnorm1d(x, y, embed_weight_nb, C, bias=False)
    out_nb = jax.block_until_ready(out_nb)
    ref_nb = embed_weight_nb[y] * ref_bn
    assert jnp.allclose(out_nb, ref_nb, atol=1e-5, rtol=1e-5), "bias=False mismatch vs reference"

    print("KERNEL_OK")
</pallas_src>

<mosaic_0001>
module attributes {stable_mosaic.version = 11 : i64} {
  func.func @_cbn_kernel_bias(%arg0: i32, %arg1: memref<8x1xi32, #tpu.memory_space<vmem>>, %arg2: memref<8x16xf32, #tpu.memory_space<vmem>>, %arg3: memref<10x16xf32, #tpu.memory_space<vmem>>, %arg4: memref<10x16xf32, #tpu.memory_space<vmem>>, %arg5: memref<8x16xf32, #tpu.memory_space<vmem>>) attributes {dimension_semantics = [#tpu.dimension_semantics<parallel>], iteration_bounds = array<i64: 1>, scalar_prefetch = 0 : i64, scratch_operands = 0 : i64, tpu.core_type = #tpu.core_type<tc>, window_params = [{pipeline_mode = #tpu.pipeline_mode<synchronous>, transform_indices = @transform_0, window_bounds = array<i64: 8, 1>}, {transform_indices = @transform_1, window_bounds = array<i64: 8, 16>}, {transform_indices = @transform_2, window_bounds = array<i64: 10, 16>}, {transform_indices = @transform_3, window_bounds = array<i64: 10, 16>}, {transform_indices = @transform_4, window_bounds = array<i64: 8, 16>}]} {
    %c0 = arith.constant 0 : index
    %c0_0 = arith.constant 0 : index
    %0 = vector.load %arg2[%c0, %c0_0] : memref<8x16xf32, #tpu.memory_space<vmem>>, vector<8x16xf32>
    %cst = arith.constant dense<0.000000e+00> : vector<16xf32>
    %1 = vector.multi_reduction <add>, %0, %cst [0] : vector<8x16xf32> to vector<16xf32>
    %2 = vector.shape_cast %1 : vector<16xf32> to vector<1x16xf32>
    %cst_1 = arith.constant 1.250000e-01 : f32
    %3 = vector.broadcast %cst_1 : f32 to vector<1x16xf32>
    %4 = arith.mulf %2, %3 : vector<1x16xf32>
    %5 = vector.broadcast %4 : vector<1x16xf32> to vector<8x16xf32>
    %6 = arith.subf %0, %5 : vector<8x16xf32>
    %7 = arith.mulf %6, %6 : vector<8x16xf32>
    %cst_2 = arith.constant dense<0.000000e+00> : vector<16xf32>
    %8 = vector.multi_reduction <add>, %7, %cst_2 [0] : vector<8x16xf32> to vector<16xf32>
    %9 = vector.shape_cast %8 : vector<16xf32> to vector<1x16xf32>
    %cst_3 = arith.constant 1.250000e-01 : f32
    %10 = vector.broadcast %cst_3 : f32 to vector<1x16xf32>
    %11 = arith.mulf %9, %10 : vector<1x16xf32>
    %cst_4 = arith.constant 9.99999974E-6 : f32
    %12 = vector.broadcast %cst_4 : f32 to vector<1x16xf32>
    %13 = arith.addf %11, %12 : vector<1x16xf32>
    %14 = math.rsqrt %13 : vector<1x16xf32>
    %15 = vector.broadcast %14 : vector<1x16xf32> to vector<8x16xf32>
    %16 = arith.mulf %6, %15 : vector<8x16xf32>
    %c0_5 = arith.constant 0 : index
    %c0_6 = arith.constant 0 : index
    %17 = vector.load %arg1[%c0_5, %c0_6] : memref<8x1xi32, #tpu.memory_space<vmem>>, vector<8x1xi32>
    %18 = tpu.iota {dimensions = array<i32: 1>} : vector<8x10xi32>
    %19 = vector.broadcast %17 : vector<8x1xi32> to vector<8x10xi32>
    %20 = arith.cmpi eq, %19, %18 : vector<8x10xi32>
    %21 = arith.extui %20 : vector<8x10xi1> to vector<8x10xi32>
    %22 = arith.sitofp %21 : vector<8x10xi32> to vector<8x10xf32>
    %c0_7 = arith.constant 0 : index
    %c0_8 = arith.constant 0 : index
    %23 = vector.load %arg3[%c0_7, %c0_8] : memref<10x16xf32, #tpu.memory_space<vmem>>, vector<10x16xf32>
    %cst_9 = arith.constant dense<0.000000e+00> : vector<8x16xf32>
    %24 = tpu.matmul %22, %23, %cst_9 {dimension_numbers = #tpu.dot_dimension_numbers<[1], [0], [0], [1], [0, 0, 1, 1], [], []>} : vector<8x10xf32>, vector<10x16xf32>, vector<8x16xf32> -> vector<8x16xf32>
    %c0_10 = arith.constant 0 : index
    %c0_11 = arith.constant 0 : index
    %25 = vector.load %arg4[%c0_10, %c0_11] : memref<10x16xf32, #tpu.memory_space<vmem>>, vector<10x16xf32>
    %cst_12 = arith.constant dense<0.000000e+00> : vector<8x16xf32>
    %26 = tpu.matmul %22, %25, %cst_12 {dimension_numbers = #tpu.dot_dimension_numbers<[1], [0], [0], [1], [0, 0, 1, 1], [], []>} : vector<8x10xf32>, vector<10x16xf32>, vector<8x16xf32> -> vector<8x16xf32>
    %27 = arith.mulf %24, %16 : vector<8x16xf32>
    %28 = arith.addf %27, %26 : vector<8x16xf32>
    %c0_13 = arith.constant 0 : index
    %c0_14 = arith.constant 0 : index
    %29 = vector.load %arg5[%c0_13, %c0_14] : memref<8x16xf32, #tpu.memory_space<vmem>>, vector<8x16xf32>
    tpu.vector_store %arg5[%c0_13, %c0_14], %28 {strides = array<i32>} : memref<8x16xf32, #tpu.memory_space<vmem>>, vector<8x16xf32>,
    return
  }
  func.func @transform_0(%arg0: i32) -> (i32, i32) {
    %c0_i32 = arith.constant 0 : i32
    %c0_i32_0 = arith.constant 0 : i32
    %c0_i32_1 = arith.constant 0 : i32
    return %c0_i32, %c0_i32_0 : i32, i32
  }
  func.func @transform_1(%arg0: i32) -> (i32, i32) {
    %c0_i32 = arith.constant 0 : i32
    %c0_i32_0 = arith.constant 0 : i32
    return %c0_i32, %arg0 : i32, i32
  }
  func.func @transform_2(%arg0: i32) -> (i32, i32) {
    %c0_i32 = arith.constant 0 : i32
    %c0_i32_0 = arith.constant 0 : i32
    return %c0_i32, %arg0 : i32, i32
  }
  func.func @transform_3(%arg0: i32) -> (i32, i32) {
    %c0_i32 = arith.constant 0 : i32
    %c0_i32_0 = arith.constant 0 : i32
    return %c0_i32, %arg0 : i32, i32
  }
  func.func @transform_4(%arg0: i32) -> (i32, i32) {
    %c0_i32 = arith.constant 0 : i32
    %c0_i32_0 = arith.constant 0 : i32
    return %c0_i32, %arg0 : i32, i32
  }
}

</mosaic_0001>

<llo_original>
// kernel: tpu_custom_call.1
$region0: #{tpu_custom_call.1}
  #allocation0 [shape = 'u32[]', space=smem, size = 0x4, offset = 0x4, fixed_abs, tag = 'smem constant byte address 0x4 - core index']
  #allocation1 [shape = 'u32[144,128]{1,0:T(1,128)}', space=vmem, size = 0x12000, scoped, tag = 'internal scratch']
  %s0 = inlined_call_operand.vmem [shape: s32[8,1], index: 0, kind: input, shape index: {}]
  %s1 = inlined_call_operand.vmem [shape: f32[8,16], index: 1, kind: input, shape index: {}]
  %s2 = inlined_call_operand.hbm [shape: f32[10,16], index: 2, kind: input, shape index: {}]
  %s3 = inlined_call_operand.hbm [shape: f32[10,16], index: 3, kind: input, shape index: {}]
  %s4 = inlined_call_operand.hbm [shape: f32[8,16], index: 4, kind: output, shape index: {}]
  %s5 = sld [smem:[#allocation0]]
  $region34: #{tpu_custom_call.1} parent=0
    _
  %s7 = ssub.s32 1, %s5
  %s8 = scalar_select 0, %s7, %s5
  $region1: #{tpu_custom_call.1} parent=0
    #allocation2 [shape = 'u8[8192]{0}', space=vmem, size = 0x2000, scoped, tag = 'input window, operand 2, single buffered']
    #allocation3 [shape = 's32[1]{0}', space=sflag, size = 0x4, scoped, tag = 'scoped memory for tpu_custom_call.1']
    #allocation4 [shape = 's32[1]{0}', space=sflag, size = 0x4, scoped, tag = 'scoped memory for tpu_custom_call.1']
    #allocation5 [shape = 'u8[8192]{0}', space=vmem, size = 0x2000, scoped, tag = 'input window, operand 3, single buffered']
    #allocation6 [shape = 's32[1]{0}', space=sflag, size = 0x4, scoped, tag = 'scoped memory for tpu_custom_call.1']
    #allocation7 [shape = 'u8[4096]{0}', space=vmem, size = 0x1000, scoped, tag = 'output window, operand 0, single buffered']
    %9 = vsyncpa [#allocation3], 0
    %10 = vsyncpa [#allocation6], 0
    %11 = vsyncpa [#allocation4], 0
    // Predicated region
    $region2: #{tpu_custom_call.1} parent=1 // pred_check
      _
    $region3: #{tpu_custom_call.1} parent=1 // pred_check_branch
      %13 = sbr.rel (0) target = $region5
    $region4: #{tpu_custom_call.1} parent=1 // pred_region
      _
    $region5: #{tpu_custom_call.1} parent=1 // pred_fallthru
      _
    // Predicated region
    $region6: #{tpu_custom_call.1} parent=1 // pred_check
      _
    $region7: #{tpu_custom_call.1} parent=1 // pred_check_branch
      %15 = sbr.rel (0) target = $region9
    $region8: #{tpu_custom_call.1} parent=1 // pred_region
      _
    $region9: #{tpu_custom_call.1} parent=1 // pred_fallthru
      _
    // Predicated region
    $region10: #{tpu_custom_call.1} parent=1 // pred_check
      _
    $region11: #{tpu_custom_call.1} parent=1 // pred_check_branch
      %17 = sbr.rel (0) target = $region13
    $region12: #{tpu_custom_call.1} parent=1 // pred_region
      %s19 = ssub.s32 256, 256
      %20 = vsyncadd [#allocation3], %s19
      %s21 = sshll.u32 [#allocation2], 4
      %s22 = int_to_ptr.vmem [resolvable:$true] %s21
      %27 = dma.hbm_to_vmem [thread:$0]  %s2, 256, %s22, [#allocation3], 128, 128, 8
    $region13: #{tpu_custom_call.1} parent=1 // pred_fallthru
      _
    // Predicated region
    $region14: #{tpu_custom_call.1} parent=1 // pred_check
      _
    $region15: #{tpu_custom_call.1} parent=1 // pred_check_branch
      %29 = sbr.rel (0) target = $region17
    $region16: #{tpu_custom_call.1} parent=1 // pred_region
      %s31 = ssub.s32 256, 256
      %32 = vsyncadd [#allocation6], %s31
      %s33 = sshll.u32 [#allocation5], 4
      %s34 = int_to_ptr.vmem [resolvable:$true] %s33
      %39 = dma.hbm_to_vmem [thread:$0]  %s3, 256, %s34, [#allocation6], 128, 128, 8
    $region17: #{tpu_custom_call.1} parent=1 // pred_fallthru
      _
    // Predicated region
    $region18: #{tpu_custom_call.1} parent=1 // pred_check
      _
    $region19: #{tpu_custom_call.1} parent=1 // pred_check_branch
      %41 = sbr.rel (0) target = $region21
    $region20: #{tpu_custom_call.1} parent=1 // pred_region
      %42 = dma.done [#allocation3], 256
    $region21: #{tpu_custom_call.1} parent=1 // pred_fallthru
      _
    // Predicated region
    $region22: #{tpu_custom_call.1} parent=1 // pred_check
      _
    $region23: #{tpu_custom_call.1} parent=1 // pred_check_branch
      %44 = sbr.rel (0) target = $region25
    $region24: #{tpu_custom_call.1} parent=1 // pred_region
      %45 = dma.done [#allocation6], 256
    $region25: #{tpu_custom_call.1} parent=1 // pred_fallthru
      _
    %v46 = vld [vmem:[%s1] sm:$0xff]
    %vm47 = vcmask 130048
    %v48 = vsel %vm47, %v46, 0.0
    %v49 = vrot.slane %v48, 4
    %v50 = vadd.f32 %v48, %v49
    %v51 = vrot.slane %v50, 2
    %v52 = vadd.f32 %v50, %v51
    %v53 = vrot.slane %v52, 1
    %v54 = vadd.f32 %v52, %v53
    %v55 = vmul.f32 %v54, 0.125
    %v56 = vsub.f32 %v46, %v55
    %v57 = vmul.f32 %v56, %v56
    %v58 = vsel %vm47, %v57, 0.0
    %v59 = vrot.slane %v58, 4
    %v60 = vadd.f32 %v58, %v59
    %v61 = vrot.slane %v60, 2
    %v62 = vadd.f32 %v60, %v61
    %v63 = vrot.slane %v62, 1
    %v64 = vadd.f32 %v62, %v63
    %v65 = vmul.f32 %v64, 0.125
    %v66 = vadd.f32 %v65, 1e-05
    %v67 = vrsqrt.pop %v66
    %v68 = vmul.f32 %v56, %v67
    %v69 = vld [vmem:[%s0] sm:$0xff]
    %v70 = vlaneseq
    %v71 = vand.u32 %v70, 127
    %72 = vset.pattern.permute.xlu0 0
    %73 = vperm.xlu0 %72, %v69
    %v74 = vpop.permute.xlu0 %73
    %vm75 = vcmp.eq.s32.totalorder %v74, %v71
    %v76 = vsel %vm75, 1, 0
    %v77 = vcvt.s32.f32 %v76
    %v78 = vld [vmem:[#allocation2] sm:$0xff]
    %v79 = vld [vmem:[#allocation2 + $0x8] sm:$0x3]
    %vm80 = vcmask 80896
    %v82 = vsel %vm80, %v77, 0
    %vm84 = vcmask 1041408
    %v86 = vsel %vm84, %v79, 0
    %88 = vmatprep.subr.mxu0 0.0
    %89 = vmatpush1.msra.mxu0 0.0
    %90 = vmatprep.subr.mxu0 0.0
    %91 = vmatpush1.msra.mxu0 0.0
    %92 = vmatprep.subr.mxu0 0.0
    %93 = vmatpush1.msra.mxu0 0.0
    %94 = vmatprep.subr.mxu0 0.0
    %95 = vmatpush1.msra.mxu0 0.0
    %96 = vmatprep.subr.mxu0 0.0
    %97 = vmatpush1.msra.mxu0 0.0
    %98 = vmatprep.subr.mxu0 0.0
    %99 = vmatpush1.msra.mxu0 0.0
    %100 = vmatprep.subr.mxu0 0.0
    %101 = vmatpush1.msra.mxu0 0.0
    %102 = vmatprep.subr.mxu0 0.0
    %103 = vmatpush1.msra.mxu0 0.0
    %104 = vmatprep.subr.mxu0 0.0
    %105 = vmatpush1.msra.mxu0 0.0
    %106 = vmatprep.subr.mxu0 0.0
    %107 = vmatpush1.msra.mxu0 0.0
    %108 = vmatprep.subr.mxu0 0.0
    %109 = vmatpush1.msra.mxu0 0.0
    %110 = vmatprep.subr.mxu0 0.0
    %111 = vmatpush1.msra.mxu0 0.0
    %112 = vmatprep.subr.mxu0 0.0
    %113 = vmatpush1.msra.mxu0 0.0
    %114 = vmatprep.subr.mxu0 0.0
    %115 = vmatpush1.msra.mxu0 0.0
    %116 = vmatprep.subr.mxu0 0.0
    %117 = vmatpush1.msra.mxu0 %v86
    %118 = vmatprep.subr.mxu0 0.0
    %119 = vmatpush1.msra.mxu0 %v78
    %120 = vmatprep.subr.mxu0 0.0
    %121 = vmatpush2.msra.mxu0 0.0
    %122 = vmatprep.subr.mxu0 0.0
    %123 = vmatpush2.msra.mxu0 0.0
    %124 = vmatprep.subr.mxu0 0.0
    %125 = vmatpush2.msra.mxu0 0.0
    %126 = vmatprep.subr.mxu0 0.0
    %127 = vmatpush2.msra.mxu0 0.0
    %128 = vmatprep.subr.mxu0 0.0
    %129 = vmatpush2.msra.mxu0 0.0
    %130 = vmatprep.subr.mxu0 0.0
    %131 = vmatpush2.msra.mxu0 0.0
    %132 = vmatprep.subr.mxu0 0.0
    %133 = vmatpush2.msra.mxu0 0.0
    %134 = vmatprep.subr.mxu0 0.0
    %135 = vmatpush2.msra.mxu0 0.0
    %136 = vmatprep.subr.mxu0 0.0
    %137 = vmatpush2.msra.mxu0 0.0
    %138 = vmatprep.subr.mxu0 0.0
    %139 = vmatpush2.msra.mxu0 0.0
    %140 = vmatprep.subr.mxu0 0.0
    %141 = vmatpush2.msra.mxu0 0.0
    %142 = vmatprep.subr.mxu0 0.0
    %143 = vmatpush2.msra.mxu0 0.0
    %144 = vmatprep.subr.mxu0 0.0
    %145 = vmatpush2.msra.mxu0 0.0
    %146 = vmatprep.subr.mxu0 0.0
    %147 = vmatpush2.msra.mxu0 0.0
    %148 = vmatprep.subr.mxu0 0.0
    %149 = vmatpush2.msra.mxu0 0.0
    %150 = vmatprep.subr.mxu0 0.0
    %151 = vmatpush2.msra.mxu0 0.0
    %152 = vmatprep.mubr.f32.mxu0 0.0
    %153 = vmatmul.mubr.f32.gmra.mxu0 %v82
    %v154 = vpop.f32.mrf.mxu0
    %v155 = vadd.f32 0.0, %v154
    %v156 = vpop.f32.mrf.mxu0
    %157 = vdwg.mxu0
    %v158 = vld [vmem:[#allocation5] sm:$0xff]
    %v159 = vld [vmem:[#allocation5 + $0x8] sm:$0x3]
    %v161 = vsel %vm84, %v159, 0
    %163 = vmatprep.subr.mxu0 0.0
    %164 = vmatpush1.msra.mxu0 0.0
    %165 = vmatprep.subr.mxu0 0.0
    %166 = vmatpush1.msra.mxu0 0.0
    %167 = vmatprep.subr.mxu0 0.0
    %168 = vmatpush1.msra.mxu0 0.0
    %169 = vmatprep.subr.mxu0 0.0
    %170 = vmatpush1.msra.mxu0 0.0
    %171 = vmatprep.subr.mxu0 0.0
    %172 = vmatpush1.msra.mxu0 0.0
    %173 = vmatprep.subr.mxu0 0.0
    %174 = vmatpush1.msra.mxu0 0.0
    %175 = vmatprep.subr.mxu0 0.0
    %176 = vmatpush1.msra.mxu0 0.0
    %177 = vmatprep.subr.mxu0 0.0
    %178 = vmatpush1.msra.mxu0 0.0
    %179 = vmatprep.subr.mxu0 0.0
    %180 = vmatpush1.msra.mxu0 0.0
    %181 = vmatprep.subr.mxu0 0.0
    %182 = vmatpush1.msra.mxu0 0.0
    %183 = vmatprep.subr.mxu0 0.0
    %184 = vmatpush1.msra.mxu0 0.0
    %185 = vmatprep.subr.mxu0 0.0
    %186 = vmatpush1.msra.mxu0 0.0
    %187 = vmatprep.subr.mxu0 0.0
    %188 = vmatpush1.msra.mxu0 0.0
    %189 = vmatprep.subr.mxu0 0.0
    %190 = vmatpush1.msra.mxu0 0.0
    %191 = vmatprep.subr.mxu0 0.0
    %192 = vmatpush1.msra.mxu0 %v161
    %193 = vmatprep.subr.mxu0 0.0
    %194 = vmatpush1.msra.mxu0 %v158
    %195 = vmatprep.subr.mxu0 0.0
    %196 = vmatpush2.msra.mxu0 0.0
    %197 = vmatprep.subr.mxu0 0.0
    %198 = vmatpush2.msra.mxu0 0.0
    %199 = vmatprep.subr.mxu0 0.0
    %200 = vmatpush2.msra.mxu0 0.0
    %201 = vmatprep.subr.mxu0 0.0
    %202 = vmatpush2.msra.mxu0 0.0
    %203 = vmatprep.subr.mxu0 0.0
    %204 = vmatpush2.msra.mxu0 0.0
    %205 = vmatprep.subr.mxu0 0.0
    %206 = vmatpush2.msra.mxu0 0.0
    %207 = vmatprep.subr.mxu0 0.0
    %208 = vmatpush2.msra.mxu0 0.0
    %209 = vmatprep.subr.mxu0 0.0
    %210 = vmatpush2.msra.mxu0 0.0
    %211 = vmatprep.subr.mxu0 0.0
    %212 = vmatpush2.msra.mxu0 0.0
    %213 = vmatprep.subr.mxu0 0.0
    %214 = vmatpush2.msra.mxu0 0.0
    %215 = vmatprep.subr.mxu0 0.0
    %216 = vmatpush2.msra.mxu0 0.0
    %217 = vmatprep.subr.mxu0 0.0
    %218 = vmatpush2.msra.mxu0 0.0
    %219 = vmatprep.subr.mxu0 0.0
    %220 = vmatpush2.msra.mxu0 0.0
    %221 = vmatprep.subr.mxu0 0.0
    %222 = vmatpush2.msra.mxu0 0.0
    %223 = vmatprep.subr.mxu0 0.0
    %224 = vmatpush2.msra.mxu0 0.0
    %225 = vmatprep.subr.mxu0 0.0
    %226 = vmatpush2.msra.mxu0 0.0
    %227 = vmatprep.mubr.f32.mxu0 0.0
    %228 = vmatmul.mubr.f32.gmra.mxu0 %v82
    %v229 = vpop.f32.mrf.mxu0
    %v230 = vadd.f32 0.0, %v229
    %v231 = vpop.f32.mrf.mxu0
    %232 = vdwg.mxu0
    %v233 = vmul.f32 %v155, %v68
    %v234 = vadd.f32 %v233, %v230
    %235 = vst.msk [vmem:[#allocation7] sm:$0xff] %vm47, %v234
    // Predicated region
    $region26: #{tpu_custom_call.1} parent=1 // pred_check
      _
    $region27: #{tpu_custom_call.1} parent=1 // pred_check_branch
      %237 = sbr.rel (0) target = $region29
    $region28: #{tpu_custom_call.1} parent=1 // pred_region
      %s239 = ssub.s32 128, 128
      %240 = vsyncadd [#allocation4], %s239
      %s242 = sshll.u32 [#allocation7], 4
      %s243 = int_to_ptr.vmem [resolvable:$true] %s242
      %245 = dma.vmem_to_hbm [thread:$0]  %s243, 128, %s4, [#allocation4]
    $region29: #{tpu_custom_call.1} parent=1 // pred_fallthru
      _
    // Predicated region
    $region30: #{tpu_custom_call.1} parent=1 // pred_check
      _
    $region31: #{tpu_custom_call.1} parent=1 // pred_check_branch
      %247 = sbr.rel (0) target = $region33
    $region32: #{tpu_custom_call.1} parent=1 // pred_region
      %248 = dma.done [#allocation4], 128
    $region33: #{tpu_custom_call.1} parent=1 // pred_fallthru
      _
    %249 = vsyncpa [#allocation3], 1
    %250 = vsyncpa [#allocation6], 1
    %251 = vsyncpa [#allocation4], 1

</llo_original>
